<compile_context>
chip_gen: v7x
topology: tpu7x:2x2x1
jax: 0.10.0
libtpu: 0.0.40
codegen_flags: <defaults>
</compile_context>

<pallas_src>
import functools
import math

import numpy as np
import jax
import jax.numpy as jnp
from jax.experimental import pallas as pl
from jax.experimental.pallas import tpu as pltpu


def _cosine_cutoff_kernel(x_ref, r_ref, sel_ref, o_ref, *, scale):
    # x_ref: (TM, fold*F), r_ref: (TM, fold*P), sel_ref: (fold*P, fold*F)
    x = x_ref[...]
    r = r_ref[...].astype(jnp.float32)
    rsq = r * r

    # One MXU matmul: per-row-group sum of squared components, broadcast across
    # that group's F output lanes (sel is a 0/1 selection matrix). HIGHEST
    # precision keeps the f32 sum exact; the MXU is idle so the passes are free.
    n2 = jnp.dot(rsq, sel_ref[...],
                 precision=jax.lax.Precision.HIGHEST,
                 preferred_element_type=jnp.float32)          # (TM, fold*F)

    # Full-width EUP work: sqrt + cos on whole 128-lane vregs.
    w = 0.5 * (jnp.cos(jnp.sqrt(n2) * scale) + 1.0)           # f32
    # Multiply in x's native dtype (exact for f32; avoids an f32 round-trip
    # for bf16 inputs).
    o_ref[...] = (w.astype(x.dtype) * x).astype(o_ref.dtype)


def _selection_matrix(fold, P, F):
    """S[g*P + c, g*F + f] = 1: sums the P squared components of row-group g
    and broadcasts the result across that group's F output lanes."""
    S = np.zeros((fold * P, fold * F), dtype=np.float32)
    for g in range(fold):
        S[g * P:(g + 1) * P, g * F:(g + 1) * F] = 1.0
    return jnp.asarray(S)


def cosine_cutoff(x, r_ij, r_cut=2.0, *, tile_rows=2048):
    """x: (N, F), r_ij: (N, P). Returns (N, F) = cutoff(||r_ij||) * x."""
    N, F = x.shape
    _, P = r_ij.shape

    # Lane-dense refold: pack `fold` consecutive rows into one 128-lane row.
    fold = (128 // F) if (0 < F < 128 and 128 % F == 0) else 1

    # Only the row-fold remainder (< fold rows) ever needs padding; the
    # block-ragged tail is handled by Pallas' masked last grid block, so the
    # common path performs zero extra HBM copies.
    rem = N % fold
    if rem:
        pad = fold - rem
        x_k = jnp.pad(x, ((0, pad), (0, 0)))      # padded rows -> 0 output, sliced off
        r_k = jnp.pad(r_ij, ((0, pad), (0, 0)))
    else:
        pad = 0
        x_k, r_k = x, r_ij
    N_main = N + pad
    Nf = N_main // fold

    x2 = x_k.reshape(Nf, fold * F)   # contiguous regroup: layout-preserving (free)
    r2 = r_k.reshape(Nf, fold * P)
    sel = _selection_matrix(fold, P, F)

    # Row tile: big (amortize per-step overhead), a multiple of 8 sublanes, and
    # >= 2 grid steps whenever possible so both v7x TensorCores stay busy.
    if Nf <= 8:
        block = Nf
    else:
        target = min(tile_rows, pl.cdiv(Nf, 2))
        block = max(8, (target // 8) * 8)
    grid = (pl.cdiv(Nf, block),)

    kernel = functools.partial(_cosine_cutoff_kernel,
                               scale=math.pi / float(r_cut))

    out2 = pl.pallas_call(
        kernel,
        out_shape=jax.ShapeDtypeStruct((Nf, fold * F), x.dtype),
        grid_spec=pltpu.PrefetchScalarGridSpec(
            num_scalar_prefetch=0,
            grid=grid,
            in_specs=[
                pl.BlockSpec((block, fold * F), lambda i: (i, 0)),
                pl.BlockSpec((block, fold * P), lambda i: (i, 0)),
                pl.BlockSpec((fold * P, fold * F), lambda i: (0, 0)),
            ],
            out_specs=pl.BlockSpec((block, fold * F), lambda i: (i, 0)),
        ),
        compiler_params=pltpu.CompilerParams(
            dimension_semantics=("parallel",),
        ),
        cost_estimate=pl.CostEstimate(
            flops=2 * Nf * (fold * P) * (fold * F) + 4 * N_main * F,
            transcendentals=2 * Nf * fold * F,       # full-width sqrt + cos
            bytes_accessed=(2 * N_main * F * x.dtype.itemsize
                            + N_main * P * r_ij.dtype.itemsize)),
    )(x2, r2, sel)

    out = out2.reshape(N_main, F)
    return out[:N] if rem else out


def cosine_cutoff_ref(x, r_ij, r_cut=2.0):
    norm = jnp.linalg.norm(r_ij, axis=1, keepdims=True)
    return 0.5 * (jnp.cos(jnp.pi * norm / r_cut) + 1.0) * x


if __name__ == "__main__":
    # CosineCutoff has no learned parameters; r_cut=2.0, num_phys_dims=3 are
    # the module defaults.
    r_cut = 2.0
    num_phys_dims = 3

    key = jax.random.PRNGKey(0)
    kx, kr, kx2, kr2 = jax.random.split(key, 4)

    # Small example consistent with the module: 128 edges, 32 features.
    N, F = 128, 32
    x = jax.random.normal(kx, (N, F), dtype=jnp.float32)
    r_ij = jax.random.normal(kr, (N, num_phys_dims), dtype=jnp.float32)

    out = jax.block_until_ready(cosine_cutoff(x, r_ij, r_cut))
    ref = cosine_cutoff_ref(x, r_ij, r_cut)
    assert out.shape == (N, F) and out.dtype == x.dtype
    assert jnp.allclose(out, ref, atol=1e-5, rtol=1e-5), "mismatch vs reference"

    # Ragged N: exercises the masked last grid block AND the fold-remainder path.
    N2 = 1003
    x_b = jax.random.normal(kx2, (N2, F), dtype=jnp.float32)
    r_b = jax.random.normal(kr2, (N2, num_phys_dims), dtype=jnp.float32)
    out_b = jax.block_until_ready(cosine_cutoff(x_b, r_b, r_cut))
    ref_b = cosine_cutoff_ref(x_b, r_b, r_cut)
    assert out_b.shape == (N2, F)
    assert jnp.allclose(out_b, ref_b, atol=1e-5, rtol=1e-5), "mismatch (ragged N)"

    print("KERNEL_OK")
</pallas_src>

<mosaic_0001>
module attributes {stable_mosaic.version = 11 : i64} {
  func.func @_cosine_cutoff_kernel(%arg0: i32, %arg1: memref<16x128xf32, #tpu.memory_space<vmem>>, %arg2: memref<16x12xf32, #tpu.memory_space<vmem>>, %arg3: memref<12x128xf32, #tpu.memory_space<vmem>>, %arg4: memref<16x128xf32, #tpu.memory_space<vmem>>) attributes {dimension_semantics = [#tpu.dimension_semantics<parallel>], iteration_bounds = array<i64: 2>, scalar_prefetch = 0 : i64, scratch_operands = 0 : i64, tpu.core_type = #tpu.core_type<tc>, window_params = [{transform_indices = @transform_0, window_bounds = array<i64: 16, 128>}, {transform_indices = @transform_1, window_bounds = array<i64: 16, 12>}, {pipeline_mode = #tpu.pipeline_mode<synchronous>, transform_indices = @transform_2, window_bounds = array<i64: 12, 128>}, {transform_indices = @transform_3, window_bounds = array<i64: 16, 128>}]} {
    %c0 = arith.constant 0 : index
    %c0_0 = arith.constant 0 : index
    %0 = vector.load %arg1[%c0, %c0_0] : memref<16x128xf32, #tpu.memory_space<vmem>>, vector<16x128xf32>
    %c0_1 = arith.constant 0 : index
    %c0_2 = arith.constant 0 : index
    %1 = vector.load %arg2[%c0_1, %c0_2] : memref<16x12xf32, #tpu.memory_space<vmem>>, vector<16x12xf32>
    %2 = arith.mulf %1, %1 : vector<16x12xf32>
    %c0_3 = arith.constant 0 : index
    %c0_4 = arith.constant 0 : index
    %3 = vector.load %arg3[%c0_3, %c0_4] : memref<12x128xf32, #tpu.memory_space<vmem>>, vector<12x128xf32>
    %cst = arith.constant dense<0.000000e+00> : vector<16x128xf32>
    %4 = tpu.matmul %2, %3, %cst {dimension_numbers = #tpu.dot_dimension_numbers<[1], [0], [0], [1], [0, 0, 1, 1], [], []>, precision = #tpu.contract_precision<fp32>} : vector<16x12xf32>, vector<12x128xf32>, vector<16x128xf32> -> vector<16x128xf32>
    %5 = math.sqrt %4 : vector<16x128xf32>
    %cst_5 = arith.constant 1.57079637 : f32
    %6 = vector.broadcast %cst_5 : f32 to vector<16x128xf32>
    %7 = arith.mulf %5, %6 : vector<16x128xf32>
    %8 = math.cos %7 : vector<16x128xf32>
    %cst_6 = arith.constant 1.000000e+00 : f32
    %9 = vector.broadcast %cst_6 : f32 to vector<16x128xf32>
    %10 = arith.addf %8, %9 : vector<16x128xf32>
    %cst_7 = arith.constant 5.000000e-01 : f32
    %11 = vector.broadcast %cst_7 : f32 to vector<16x128xf32>
    %12 = arith.mulf %11, %10 : vector<16x128xf32>
    %13 = arith.mulf %12, %0 : vector<16x128xf32>
    %c0_8 = arith.constant 0 : index
    %c0_9 = arith.constant 0 : index
    %14 = vector.load %arg4[%c0_8, %c0_9] : memref<16x128xf32, #tpu.memory_space<vmem>>, vector<16x128xf32>
    tpu.vector_store %arg4[%c0_8, %c0_9], %13 {strides = array<i32>} : memref<16x128xf32, #tpu.memory_space<vmem>>, vector<16x128xf32>,
    return
  }
  func.func @transform_0(%arg0: i32) -> (i32, i32) {
    %c0_i32 = arith.constant 0 : i32
    %c0_i32_0 = arith.constant 0 : i32
    return %arg0, %c0_i32 : i32, i32
  }
  func.func @transform_1(%arg0: i32) -> (i32, i32) {
    %c0_i32 = arith.constant 0 : i32
    %c0_i32_0 = arith.constant 0 : i32
    return %arg0, %c0_i32 : i32, i32
  }
  func.func @transform_2(%arg0: i32) -> (i32, i32) {
    %c0_i32 = arith.constant 0 : i32
    %c0_i32_0 = arith.constant 0 : i32
    %c0_i32_1 = arith.constant 0 : i32
    return %c0_i32, %c0_i32_0 : i32, i32
  }
  func.func @transform_3(%arg0: i32) -> (i32, i32) {
    %c0_i32 = arith.constant 0 : i32
    %c0_i32_0 = arith.constant 0 : i32
    return %arg0, %c0_i32 : i32, i32
  }
}

</mosaic_0001>

<llo_original>
// kernel: tpu_custom_call.1
$region0: #{tpu_custom_call.1}
  #allocation0 [shape = 'u32[]', space=smem, size = 0x4, offset = 0x4, fixed_abs, tag = 'smem constant byte address 0x4 - core index']
  #allocation1 [shape = 'u32[144,128]{1,0:T(1,128)}', space=vmem, size = 0x12000, scoped, tag = 'internal scratch']
  %s0 = inlined_call_operand.vmem [shape: f32[32,128], index: 0, kind: input, shape index: {}]
  %s1 = inlined_call_operand.vmem [shape: f32[32,12], index: 1, kind: input, shape index: {}]
  %s2 = inlined_call_operand.vmem [shape: f32[12,128], index: 2, kind: input, shape index: {}]
  %s3 = inlined_call_operand.hbm [shape: f32[32,128], index: 3, kind: output, shape index: {}]
  %s4 = sld [smem:[#allocation0]]
  $region45: #{tpu_custom_call.1} parent=0
    _
  %s6 = ssub.s32 1, %s4
  %s7 = scalar_select 0, %s6, %s4
  $region1: #{tpu_custom_call.1} parent=0
    #allocation2 [shape = 'u8[16384]{0}', space=vmem, size = 0x4000, scoped, tag = 'output window, operand 0']
    #allocation3 [shape = 's32[2]{0}', space=sflag, size = 0x8, scoped, tag = 'scoped memory for tpu_custom_call.1']
    %8 = vsyncpa [#allocation3], 0
    %s9 = scalar_lea.sflag [#allocation3], 1
    %10 = vsyncpa %s9, 0
    loop: start=0, step=1, limit=4
    $region2: #{tpu_custom_call.1} parent=1 // loop_pre_header
      _
    $region3: #{tpu_custom_call.1} parent=1 // loop_header
      %s12 = sphi 0, %s16
      %p13 = scmp.ge.s32.totalorder %s12, 4
      %s22 = sphi 0, %s24
      %s25 = sphi 0, %s22
      %s26 = sphi 0, %s25
      %s42 = sphi 0, %s26
      %s48 = sphi 0, %s50
      %s51 = sphi 0, %s48
      %s52 = sphi 0, %s51
      %s68 = sphi 0, %s52
      %s72 = sphi 0, %s72
      %s74 = sphi 0, %s72
      %s75 = sphi 0, %s74
      %s89 = sphi 0, %s75
      %s95 = sphi 0, %s97
      %s98 = sphi 0, %s95
      %s99 = sphi 0, %s98
      %s115 = sphi 0, %s99
    $region4: #{tpu_custom_call.1} parent=1 // loop_header_branch
      %15 = sbr.rel (%p13) target = $region8
    $region5: #{tpu_custom_call.1} parent=1 // loop_body
      %s17 = ssub.s32 %s12, 1
      %s18 = ssub.s32 %s12, 2
      %s19 = sadd.s32 %s12, 1
      %s20 = ssub.s32 %s12, %s19
      %p21 = scmp.eq.s32.totalorder %s20, 0
      %s23 = sadd.s32 %s22, 1
      %s24 = scalar_select %p21, %s22, %s23
      %p27 = pneg %p21
      %p28 = scmp.eq.s32.totalorder %s12, 1
      %p29 = por %p27, %p28
      %p30 = scmp.ne.s32.totalorder %s22, %s25
      %p31 = scmp.eq.s32.totalorder %s12, 0
      %p32 = por %p30, %p31
      %p33 = scmp.ne.s32.totalorder %s22, %s25
      %p34 = scmp.eq.s32.totalorder %s17, 1
      %p35 = por %p33, %p34
      %p36 = scmp.ne.s32.totalorder %s25, %s26
      %p37 = scmp.eq.s32.totalorder %s17, 0
      %p38 = por %p36, %p37
      %p39 = scmp.ne.s32.totalorder %s25, %s26
      %p40 = scmp.eq.s32.totalorder %s18, 1
      %p41 = por %p39, %p40
      %p43 = scmp.ne.s32.totalorder %s26, %s42
      %p44 = scmp.eq.s32.totalorder %s18, 0
      %p45 = por %p43, %p44
      %s46 = ssub.s32 %s12, %s19
      %p47 = scmp.eq.s32.totalorder %s46, 0
      %s49 = sadd.s32 %s48, 1
      %s50 = scalar_select %p47, %s48, %s49
      %p53 = pneg %p47
      %p54 = scmp.eq.s32.totalorder %s12, 1
      %p55 = por %p53, %p54
      %p56 = scmp.ne.s32.totalorder %s48, %s51
      %p57 = scmp.eq.s32.totalorder %s12, 0
      %p58 = por %p56, %p57
      %p59 = scmp.ne.s32.totalorder %s48, %s51
      %p60 = scmp.eq.s32.totalorder %s17, 1
      %p61 = por %p59, %p60
      %p62 = scmp.ne.s32.totalorder %s51, %s52
      %p63 = scmp.eq.s32.totalorder %s17, 0
      %p64 = por %p62, %p63
      %p65 = scmp.ne.s32.totalorder %s51, %s52
      %p66 = scmp.eq.s32.totalorder %s18, 1
      %p67 = por %p65, %p66
      %p69 = scmp.ne.s32.totalorder %s52, %s68
      %p70 = scmp.eq.s32.totalorder %s18, 0
      %p71 = por %p69, %p70
      %s73 = sadd.s32 %s72, 1
      %p76 = scmp.eq.s32.totalorder %s12, 1
      %p77 = scmp.ne.s32.totalorder %s72, %s74
      %p78 = scmp.eq.s32.totalorder %s12, 0
      %p79 = por %p77, %p78
      %p80 = scmp.ne.s32.totalorder %s72, %s74
      %p81 = scmp.eq.s32.totalorder %s17, 1
      %p82 = por %p80, %p81
      %p83 = scmp.ne.s32.totalorder %s74, %s75
      %p84 = scmp.eq.s32.totalorder %s17, 0
      %p85 = por %p83, %p84
      %p86 = scmp.ne.s32.totalorder %s74, %s75
      %p87 = scmp.eq.s32.totalorder %s18, 1
      %p88 = por %p86, %p87
      %p90 = scmp.ne.s32.totalorder %s75, %s89
      %p91 = scmp.eq.s32.totalorder %s18, 0
      %p92 = por %p90, %p91
      %s93 = ssub.s32 %s12, %s19
      %p94 = scmp.eq.s32.totalorder %s93, 0
      %s96 = sadd.s32 %s95, 1
      %s97 = scalar_select %p94, %s95, %s96
      %p100 = pneg %p94
      %p101 = scmp.eq.s32.totalorder %s12, 1
      %p102 = por %p100, %p101
      %p103 = scmp.ne.s32.totalorder %s95, %s98
      %p104 = scmp.eq.s32.totalorder %s12, 0
      %p105 = por %p103, %p104
      %p106 = scmp.ne.s32.totalorder %s95, %s98
      %p107 = scmp.eq.s32.totalorder %s17, 1
      %p108 = por %p106, %p107
      %p109 = scmp.ne.s32.totalorder %s98, %s99
      %p110 = scmp.eq.s32.totalorder %s17, 0
      %p111 = por %p109, %p110
      %p112 = scmp.ne.s32.totalorder %s98, %s99
      %p113 = scmp.eq.s32.totalorder %s18, 1
      %p114 = por %p112, %p113
      %p116 = scmp.ne.s32.totalorder %s99, %s115
      %p117 = scmp.eq.s32.totalorder %s18, 0
      %p118 = por %p116, %p117
      %p119 = scmp.le.s32.totalorder 1, %s12
      %p120 = scmp.lt.s32.totalorder %s12, 3
      %p121 = pnand %p119, %p120
      %p122 = pneg %p121
      // Predicated region
      $region9: #{tpu_custom_call.1} parent=5 // pred_check
        _
      $region10: #{tpu_custom_call.1} parent=5 // pred_check_branch
        %124 = sbr.rel (%p121) target = $region12
      $region11: #{tpu_custom_call.1} parent=5 // pred_region
        %s125 = ssub.s32 %s12, 1
        // Predicated region
        $region13: #{tpu_custom_call.1} parent=11 // pred_check
          %p126 = pneg %p85
        $region14: #{tpu_custom_call.1} parent=11 // pred_check_branch
          %128 = sbr.rel (%p126) target = $region16
        $region15: #{tpu_custom_call.1} parent=11 // pred_region
          _
        $region16: #{tpu_custom_call.1} parent=11 // pred_fallthru
          _
      $region12: #{tpu_custom_call.1} parent=5 // pred_fallthru
        _
      %p129 = scmp.lt.s32.totalorder %s12, 2
      // Predicated region
      $region17: #{tpu_custom_call.1} parent=5 // pred_check
        %p130 = pneg %p129
      $region18: #{tpu_custom_call.1} parent=5 // pred_check_branch
        %132 = sbr.rel (%p130) target = $region20
      $region19: #{tpu_custom_call.1} parent=5 // pred_region
        // Predicated region
        $region21: #{tpu_custom_call.1} parent=19 // pred_check
          %p133 = pneg %p32
        $region22: #{tpu_custom_call.1} parent=19 // pred_check_branch
          %135 = sbr.rel (%p133) target = $region24
        $region23: #{tpu_custom_call.1} parent=19 // pred_region
          %s136 = smul.u32 2, %s12
          %p137 = scmp.lt.s32.totalorder %s136, 3
          %s138 = scalar_select %p137, %s136, 3
          %s139 = smul.addr %s138, 8
          %s140 = scalar_lea.vmem %s0, %s139
          %s141 = smul.u32 2, %s12
        $region24: #{tpu_custom_call.1} parent=19 // pred_fallthru
          _
        // Predicated region
        $region25: #{tpu_custom_call.1} parent=19 // pred_check
          %p142 = pneg %p58
        $region26: #{tpu_custom_call.1} parent=19 // pred_check_branch
          %144 = sbr.rel (%p142) target = $region28
        $region27: #{tpu_custom_call.1} parent=19 // pred_region
          %s145 = smul.u32 2, %s12
          %p146 = scmp.lt.s32.totalorder %s145, 3
          %s147 = scalar_select %p146, %s145, 3
          %s148 = smul.addr %s147, 8
          %s149 = scalar_lea.vmem %s1, %s148
          %s150 = smul.u32 2, %s12
        $region28: #{tpu_custom_call.1} parent=19 // pred_fallthru
          _
      $region20: #{tpu_custom_call.1} parent=5 // pred_fallthru
        _
      %p151 = scmp.le.s32.totalorder 1, %s12
      %p152 = scmp.lt.s32.totalorder %s12, 3
      %p153 = pnand %p151, %p152
      %p154 = pneg %p153
      // Predicated region
      $region29: #{tpu_custom_call.1} parent=5 // pred_check
        _
      $region30: #{tpu_custom_call.1} parent=5 // pred_check_branch
        %156 = sbr.rel (%p153) target = $region32
      $region31: #{tpu_custom_call.1} parent=5 // pred_region
        %s157 = ssub.s32 %s12, 1
        %s158 = smul.u32 2, %s17
        %p159 = scmp.lt.s32.totalorder %s158, 3
        %s160 = scalar_select %p159, %s158, 3
        %s161 = smul.addr %s160, 8
        %s162 = scalar_lea.vmem %s0, %s161
        %p163 = pneg %p38
        %p164 = pneg %p35
        %s165 = smul.u32 2, %s17
        %p166 = scmp.lt.s32.totalorder %s165, 3
        %s167 = scalar_select %p166, %s165, 3
        %s168 = smul.addr %s167, 8
        %s169 = scalar_lea.vmem %s1, %s168
        %p170 = pneg %p64
        %p171 = pneg %p61
        %p172 = pneg %p85
        %p173 = pneg %p82
        %p174 = pneg %p111
        %p175 = pneg %p108
        %s176 = sand.u32 %s98, 1
        %s177 = scalar_lea.sflag [#allocation3], %s176
        %s178 = sand.u32 %s98, 1
        %s179 = smul.addr %s178, 16
        %s180 = scalar_lea.vmem [#allocation2], %s179
        %s181 = smul.u32 2, %s17
        %p182 = scmp.lt.s32.totalorder %s181, 3
        %s183 = scalar_select %p182, %s181, 3
        %s184 = smul.addr %s183, 8
        %s185 = scalar_lea.vmem %s0, %s184
        %s186 = smul.u32 2, %s17
        %s187 = smul.u32 2, %s17
        %p188 = scmp.lt.s32.totalorder %s187, 3
        %s189 = scalar_select %p188, %s187, 3
        %s190 = smul.addr %s189, 8
        %s191 = scalar_lea.vmem %s1, %s190
        %s192 = smul.u32 2, %s17
        %s193 = smul.u32 2, %s17
        %v194 = vld [vmem:[%s185] sm:$0xff]
        %v195 = vld [vmem:[%s185 + $0x8] sm:$0xff]
        %v196 = vld [vmem:[%s191] sm:$0xff]
        %v197 = vld [vmem:[%s191 + $0x8] sm:$0xff]
        %v198 = vmul.f32 %v196, %v196
        %v199 = vmul.f32 %v197, %v197
        %v200 = vld [vmem:[%s2] sm:$0xff]
        %v201 = vld [vmem:[%s2 + $0x8] sm:$0xf]
        %vm202 = vcmask 97280
        %v204 = vsel %vm202, %v198, 0
        %v207 = vsel %vm202, %v199, 0
        %vm209 = vcmask 1043456
        %v211 = vsel %vm209, %v201, 0
        %213 = vmatprep.subr.mxu0 0.0
        %v214 = vand.u32 %v200, 4294901760
        %215 = vmatpush1.msra.mxu0 %v214
        %216 = vmatprep.subr.mxu0 0.0
        %v217 = vand.u32 %v211, 4294901760
        %218 = vmatpush1.msra.mxu0 %v217
        %219 = vmatprep.subr.mxu0 0.0
        %220 = vmatpush1.msra.mxu0 0.0
        %221 = vmatprep.subr.mxu0 0.0
        %222 = vmatpush1.msra.mxu0 0.0
        %223 = vmatprep.subr.mxu0 0.0
        %224 = vmatpush1.msra.mxu0 0.0
        %225 = vmatprep.subr.mxu0 0.0
        %226 = vmatpush1.msra.mxu0 0.0
        %227 = vmatprep.subr.mxu0 0.0
        %228 = vmatpush1.msra.mxu0 0.0
        %229 = vmatprep.subr.mxu0 0.0
        %230 = vmatpush1.msra.mxu0 0.0
        %231 = vmatprep.subr.mxu0 0.0
        %232 = vmatpush1.msra.mxu0 0.0
        %233 = vmatprep.subr.mxu0 0.0
        %234 = vmatpush1.msra.mxu0 0.0
        %235 = vmatprep.subr.mxu0 0.0
        %236 = vmatpush1.msra.mxu0 0.0
        %237 = vmatprep.subr.mxu0 0.0
        %238 = vmatpush1.msra.mxu0 0.0
        %239 = vmatprep.subr.mxu0 0.0
        %240 = vmatpush1.msra.mxu0 0.0
        %241 = vmatprep.subr.mxu0 0.0
        %242 = vmatpush1.msra.mxu0 0.0
        %243 = vmatprep.subr.mxu0 0.0
        %244 = vmatpush1.msra.mxu0 0.0
        %245 = vmatprep.subr.mxu0 0.0
        %246 = vmatpush1.msra.mxu0 0.0
        %247 = vmatprep.subr.mxu0 0.0
        %248 = vmatpush1.msra.mxu0 0.0
        %249 = vmatprep.subr.mxu0 0.0
        %250 = vmatpush1.msra.mxu0 0.0
        %251 = vmatprep.subr.mxu0 0.0
        %252 = vmatpush1.msra.mxu0 0.0
        %253 = vmatprep.subr.mxu0 0.0
        %254 = vmatpush1.msra.mxu0 0.0
        %255 = vmatprep.subr.mxu0 0.0
        %256 = vmatpush1.msra.mxu0 0.0
        %257 = vmatprep.subr.mxu0 0.0
        %258 = vmatpush1.msra.mxu0 0.0
        %259 = vmatprep.subr.mxu0 0.0
        %260 = vmatpush1.msra.mxu0 0.0
        %261 = vmatprep.subr.mxu0 0.0
        %262 = vmatpush1.msra.mxu0 0.0
        %263 = vmatprep.subr.mxu0 0.0
        %264 = vmatpush1.msra.mxu0 0.0
        %265 = vmatprep.subr.mxu0 0.0
        %266 = vmatpush1.msra.mxu0 0.0
        %267 = vmatprep.subr.mxu0 0.0
        %268 = vmatpush1.msra.mxu0 0.0
        %269 = vmatprep.subr.mxu0 0.0
        %270 = vmatpush1.msra.mxu0 0.0
        %271 = vmatprep.subr.mxu0 0.0
        %272 = vmatpush1.msra.mxu0 0.0
        %273 = vmatprep.subr.mxu0 0.0
        %274 = vmatpush1.msra.mxu0 0.0
        %275 = vmatprep.subr.mxu0 0.0
        %276 = vmatpush1.msra.mxu0 0.0
        %277 = vmatprep.subr.mxu0 0.0
        %278 = vmatpush1.msra.mxu0 0.0
        %279 = vmatprep.mubr.f32.mxu0 0.0
        %v280 = vand.u32 %v204, 4294901760
        %v281 = vsub.f32 %v204, %v280
        %v282 = vand.u32 %v281, 4294901760
        %v283 = vsub.f32 %v281, %v282
        %v284 = vand.u32 %v283, 4294901760
        %285 = vmatmul.mubr.f32.gmra.mrb[0].mxu0 %v284
        %v286 = vpop.f32.mrb[0].mxu0
        %v287 = vadd.f32 0.0, %v286
        %v288 = vpop.f32.mrb[0].mxu0
        %289 = vmatprep.mubr.f32.mxu0 0.0
        %v290 = vand.u32 %v207, 4294901760
        %v291 = vsub.f32 %v207, %v290
        %v292 = vand.u32 %v291, 4294901760
        %v293 = vsub.f32 %v291, %v292
        %v294 = vand.u32 %v293, 4294901760
        %295 = vmatmul.mubr.f32.gmra.mrb[0].mxu0 %v294
        %v296 = vpop.f32.mrb[0].mxu0
        %v297 = vadd.f32 0.0, %v296
        %v298 = vpop.f32.mrb[0].mxu0
        %299 = vdwg.mxu0
        %300 = vmatprep.subr.mxu0 0.0
        %v301 = vand.u32 %v200, 4294901760
        %v302 = vsub.f32 %v200, %v301
        %v303 = vand.u32 %v302, 4294901760
        %v304 = vsub.f32 %v302, %v303
        %v305 = vand.u32 %v304, 4294901760
        %306 = vmatpush1.msra.mxu0 %v305
        %307 = vmatprep.subr.mxu0 0.0
        %v308 = vand.u32 %v211, 4294901760
        %v309 = vsub.f32 %v211, %v308
        %v310 = vand.u32 %v309, 4294901760
        %v311 = vsub.f32 %v309, %v310
        %v312 = vand.u32 %v311, 4294901760
        %313 = vmatpush1.msra.mxu0 %v312
        %314 = vmatprep.subr.mxu0 0.0
        %315 = vmatpush1.msra.mxu0 0.0
        %316 = vmatprep.subr.mxu0 0.0
        %317 = vmatpush1.msra.mxu0 0.0
        %318 = vmatprep.subr.mxu0 0.0
        %319 = vmatpush1.msra.mxu0 0.0
        %320 = vmatprep.subr.mxu0 0.0
        %321 = vmatpush1.msra.mxu0 0.0
        %322 = vmatprep.subr.mxu0 0.0
        %323 = vmatpush1.msra.mxu0 0.0
        %324 = vmatprep.subr.mxu0 0.0
        %325 = vmatpush1.msra.mxu0 0.0
        %326 = vmatprep.subr.mxu0 0.0
        %327 = vmatpush1.msra.mxu0 0.0
        %328 = vmatprep.subr.mxu0 0.0
        %329 = vmatpush1.msra.mxu0 0.0
        %330 = vmatprep.subr.mxu0 0.0
        %331 = vmatpush1.msra.mxu0 0.0
        %332 = vmatprep.subr.mxu0 0.0
        %333 = vmatpush1.msra.mxu0 0.0
        %334 = vmatprep.subr.mxu0 0.0
        %335 = vmatpush1.msra.mxu0 0.0
        %336 = vmatprep.subr.mxu0 0.0
        %337 = vmatpush1.msra.mxu0 0.0
        %338 = vmatprep.subr.mxu0 0.0
        %339 = vmatpush1.msra.mxu0 0.0
        %340 = vmatprep.subr.mxu0 0.0
        %341 = vmatpush1.msra.mxu0 0.0
        %342 = vmatprep.subr.mxu0 0.0
        %343 = vmatpush1.msra.mxu0 0.0
        %344 = vmatprep.subr.mxu0 0.0
        %345 = vmatpush1.msra.mxu0 0.0
        %346 = vmatprep.subr.mxu0 0.0
        %347 = vmatpush1.msra.mxu0 0.0
        %348 = vmatprep.subr.mxu0 0.0
        %349 = vmatpush1.msra.mxu0 0.0
        %350 = vmatprep.subr.mxu0 0.0
        %351 = vmatpush1.msra.mxu0 0.0
        %352 = vmatprep.subr.mxu0 0.0
        %353 = vmatpush1.msra.mxu0 0.0
        %354 = vmatprep.subr.mxu0 0.0
        %355 = vmatpush1.msra.mxu0 0.0
        %356 = vmatprep.subr.mxu0 0.0
        %357 = vmatpush1.msra.mxu0 0.0
        %358 = vmatprep.subr.mxu0 0.0
        %359 = vmatpush1.msra.mxu0 0.0
        %360 = vmatprep.subr.mxu0 0.0
        %361 = vmatpush1.msra.mxu0 0.0
        %362 = vmatprep.subr.mxu0 0.0
        %363 = vmatpush1.msra.mxu0 0.0
        %364 = vmatprep.subr.mxu0 0.0
        %365 = vmatpush1.msra.mxu0 0.0
        %366 = vmatprep.subr.mxu0 0.0
        %367 = vmatpush1.msra.mxu0 0.0
        %368 = vmatprep.subr.mxu0 0.0
        %369 = vmatpush1.msra.mxu0 0.0
        %370 = vmatprep.subr.mxu0 0.0
        %371 = vmatpush1.msra.mxu0 0.0
        %372 = vmatprep.subr.mxu0 0.0
        %373 = vmatpush1.msra.mxu0 0.0
        %374 = vmatprep.mubr.f32.mxu0 0.0
        %v375 = vand.u32 %v204, 4294901760
        %376 = vmatmul.mubr.f32.gmra.mrb[0].mxu0 %v375
        %v377 = vpop.f32.mrb[0].mxu0
        %v378 = vadd.f32 %v287, %v377
        %v379 = vpop.f32.mrb[0].mxu0
        %380 = vmatprep.mubr.f32.mxu0 0.0
        %v381 = vand.u32 %v207, 4294901760
        %382 = vmatmul.mubr.f32.gmra.mrb[0].mxu0 %v381
        %v383 = vpop.f32.mrb[0].mxu0
        %v384 = vadd.f32 %v297, %v383
        %v385 = vpop.f32.mrb[0].mxu0
        %386 = vdwg.mxu0
        %387 = vmatprep.subr.mxu0 0.0
        %v388 = vand.u32 %v200, 4294901760
        %v389 = vsub.f32 %v200, %v388
        %390 = vmatpush1.msra.mxu0 %v389
        %391 = vmatprep.subr.mxu0 0.0
        %v392 = vand.u32 %v211, 4294901760
        %v393 = vsub.f32 %v211, %v392
        %394 = vmatpush1.msra.mxu0 %v393
        %395 = vmatprep.subr.mxu0 0.0
        %396 = vmatpush1.msra.mxu0 0.0
        %397 = vmatprep.subr.mxu0 0.0
        %398 = vmatpush1.msra.mxu0 0.0
        %399 = vmatprep.subr.mxu0 0.0
        %400 = vmatpush1.msra.mxu0 0.0
        %401 = vmatprep.subr.mxu0 0.0
        %402 = vmatpush1.msra.mxu0 0.0
        %403 = vmatprep.subr.mxu0 0.0
        %404 = vmatpush1.msra.mxu0 0.0
        %405 = vmatprep.subr.mxu0 0.0
        %406 = vmatpush1.msra.mxu0 0.0
        %407 = vmatprep.subr.mxu0 0.0
        %408 = vmatpush1.msra.mxu0 0.0
        %409 = vmatprep.subr.mxu0 0.0
        %410 = vmatpush1.msra.mxu0 0.0
        %411 = vmatprep.subr.mxu0 0.0
        %412 = vmatpush1.msra.mxu0 0.0
        %413 = vmatprep.subr.mxu0 0.0
        %414 = vmatpush1.msra.mxu0 0.0
        %415 = vmatprep.subr.mxu0 0.0
        %416 = vmatpush1.msra.mxu0 0.0
        %417 = vmatprep.subr.mxu0 0.0
        %418 = vmatpush1.msra.mxu0 0.0
        %419 = vmatprep.subr.mxu0 0.0
        %420 = vmatpush1.msra.mxu0 0.0
        %421 = vmatprep.subr.mxu0 0.0
        %422 = vmatpush1.msra.mxu0 0.0
        %423 = vmatprep.subr.mxu0 0.0
        %424 = vmatpush1.msra.mxu0 0.0
        %425 = vmatprep.subr.mxu0 0.0
        %426 = vmatpush1.msra.mxu0 0.0
        %427 = vmatprep.subr.mxu0 0.0
        %428 = vmatpush1.msra.mxu0 0.0
        %429 = vmatprep.subr.mxu0 0.0
        %430 = vmatpush1.msra.mxu0 0.0
        %431 = vmatprep.subr.mxu0 0.0
        %432 = vmatpush1.msra.mxu0 0.0
        %433 = vmatprep.subr.mxu0 0.0
        %434 = vmatpush1.msra.mxu0 0.0
        %435 = vmatprep.subr.mxu0 0.0
        %436 = vmatpush1.msra.mxu0 0.0
        %437 = vmatprep.subr.mxu0 0.0
        %438 = vmatpush1.msra.mxu0 0.0
        %439 = vmatprep.subr.mxu0 0.0
        %440 = vmatpush1.msra.mxu0 0.0
        %441 = vmatprep.subr.mxu0 0.0
        %442 = vmatpush1.msra.mxu0 0.0
        %443 = vmatprep.subr.mxu0 0.0
        %444 = vmatpush1.msra.mxu0 0.0
        %445 = vmatprep.subr.mxu0 0.0
        %446 = vmatpush1.msra.mxu0 0.0
        %447 = vmatprep.subr.mxu0 0.0
        %448 = vmatpush1.msra.mxu0 0.0
        %449 = vmatprep.subr.mxu0 0.0
        %450 = vmatpush1.msra.mxu0 0.0
        %451 = vmatprep.subr.mxu0 0.0
        %452 = vmatpush1.msra.mxu0 0.0
        %453 = vmatprep.subr.mxu0 0.0
        %454 = vmatpush1.msra.mxu0 0.0
        %455 = vmatprep.mubr.f32.mxu0 0.0
        %v456 = vand.u32 %v204, 4294901760
        %v457 = vsub.f32 %v204, %v456
        %458 = vmatmul.mubr.f32.gmra.mrb[0].mxu0 %v457
        %v459 = vpop.f32.mrb[0].mxu0
        %v460 = vadd.f32 %v378, %v459
        %v461 = vpop.f32.mrb[0].mxu0
        %462 = vmatprep.mubr.f32.mxu0 0.0
        %v463 = vand.u32 %v207, 4294901760
        %v464 = vsub.f32 %v207, %v463
        %465 = vmatmul.mubr.f32.gmra.mrb[0].mxu0 %v464
        %v466 = vpop.f32.mrb[0].mxu0
        %v467 = vadd.f32 %v384, %v466
        %v468 = vpop.f32.mrb[0].mxu0
        %469 = vdwg.mxu0
        %470 = vmatprep.subr.mxu0 0.0
        %v471 = vand.u32 %v200, 4294901760
        %472 = vmatpush1.msra.mxu0 %v471
        %473 = vmatprep.subr.mxu0 0.0
        %v474 = vand.u32 %v211, 4294901760
        %475 = vmatpush1.msra.mxu0 %v474
        %476 = vmatprep.subr.mxu0 0.0
        %477 = vmatpush1.msra.mxu0 0.0
        %478 = vmatprep.subr.mxu0 0.0
        %479 = vmatpush1.msra.mxu0 0.0
        %480 = vmatprep.subr.mxu0 0.0
        %481 = vmatpush1.msra.mxu0 0.0
        %482 = vmatprep.subr.mxu0 0.0
        %483 = vmatpush1.msra.mxu0 0.0
        %484 = vmatprep.subr.mxu0 0.0
        %485 = vmatpush1.msra.mxu0 0.0
        %486 = vmatprep.subr.mxu0 0.0
        %487 = vmatpush1.msra.mxu0 0.0
        %488 = vmatprep.subr.mxu0 0.0
        %489 = vmatpush1.msra.mxu0 0.0
        %490 = vmatprep.subr.mxu0 0.0
        %491 = vmatpush1.msra.mxu0 0.0
        %492 = vmatprep.subr.mxu0 0.0
        %493 = vmatpush1.msra.mxu0 0.0
        %494 = vmatprep.subr.mxu0 0.0
        %495 = vmatpush1.msra.mxu0 0.0
        %496 = vmatprep.subr.mxu0 0.0
        %497 = vmatpush1.msra.mxu0 0.0
        %498 = vmatprep.subr.mxu0 0.0
        %499 = vmatpush1.msra.mxu0 0.0
        %500 = vmatprep.subr.mxu0 0.0
        %501 = vmatpush1.msra.mxu0 0.0
        %502 = vmatprep.subr.mxu0 0.0
        %503 = vmatpush1.msra.mxu0 0.0
        %504 = vmatprep.subr.mxu0 0.0
        %505 = vmatpush1.msra.mxu0 0.0
        %506 = vmatprep.subr.mxu0 0.0
        %507 = vmatpush1.msra.mxu0 0.0
        %508 = vmatprep.subr.mxu0 0.0
        %509 = vmatpush1.msra.mxu0 0.0
        %510 = vmatprep.subr.mxu0 0.0
        %511 = vmatpush1.msra.mxu0 0.0
        %512 = vmatprep.subr.mxu0 0.0
        %513 = vmatpush1.msra.mxu0 0.0
        %514 = vmatprep.subr.mxu0 0.0
        %515 = vmatpush1.msra.mxu0 0.0
        %516 = vmatprep.subr.mxu0 0.0
        %517 = vmatpush1.msra.mxu0 0.0
        %518 = vmatprep.subr.mxu0 0.0
        %519 = vmatpush1.msra.mxu0 0.0
        %520 = vmatprep.subr.mxu0 0.0
        %521 = vmatpush1.msra.mxu0 0.0
        %522 = vmatprep.subr.mxu0 0.0
        %523 = vmatpush1.msra.mxu0 0.0
        %524 = vmatprep.subr.mxu0 0.0
        %525 = vmatpush1.msra.mxu0 0.0
        %526 = vmatprep.subr.mxu0 0.0
        %527 = vmatpush1.msra.mxu0 0.0
        %528 = vmatprep.subr.mxu0 0.0
        %529 = vmatpush1.msra.mxu0 0.0
        %530 = vmatprep.subr.mxu0 0.0
        %531 = vmatpush1.msra.mxu0 0.0
        %532 = vmatprep.subr.mxu0 0.0
        %533 = vmatpush1.msra.mxu0 0.0
        %534 = vmatprep.subr.mxu0 0.0
        %535 = vmatpush1.msra.mxu0 0.0
        %536 = vmatprep.mubr.f32.mxu0 0.0
        %v537 = vand.u32 %v204, 4294901760
        %v538 = vsub.f32 %v204, %v537
        %v539 = vand.u32 %v538, 4294901760
        %540 = vmatmul.mubr.f32.gmra.mrb[0].mxu0 %v539
        %v541 = vpop.f32.mrb[0].mxu0
        %v542 = vadd.f32 %v460, %v541
        %v543 = vpop.f32.mrb[0].mxu0
        %544 = vmatprep.mubr.f32.mxu0 0.0
        %v545 = vand.u32 %v207, 4294901760
        %v546 = vsub.f32 %v207, %v545
        %v547 = vand.u32 %v546, 4294901760
        %548 = vmatmul.mubr.f32.gmra.mrb[0].mxu0 %v547
        %v549 = vpop.f32.mrb[0].mxu0
        %v550 = vadd.f32 %v467, %v549
        %v551 = vpop.f32.mrb[0].mxu0
        %552 = vdwg.mxu0
        %553 = vmatprep.subr.mxu0 0.0
        %v554 = vand.u32 %v200, 4294901760
        %v555 = vsub.f32 %v200, %v554
        %v556 = vand.u32 %v555, 4294901760
        %557 = vmatpush1.msra.mxu0 %v556
        %558 = vmatprep.subr.mxu0 0.0
        %v559 = vand.u32 %v211, 4294901760
        %v560 = vsub.f32 %v211, %v559
        %v561 = vand.u32 %v560, 4294901760
        %562 = vmatpush1.msra.mxu0 %v561
        %563 = vmatprep.subr.mxu0 0.0
        %564 = vmatpush1.msra.mxu0 0.0
        %565 = vmatprep.subr.mxu0 0.0
        %566 = vmatpush1.msra.mxu0 0.0
        %567 = vmatprep.subr.mxu0 0.0
        %568 = vmatpush1.msra.mxu0 0.0
        %569 = vmatprep.subr.mxu0 0.0
        %570 = vmatpush1.msra.mxu0 0.0
        %571 = vmatprep.subr.mxu0 0.0
        %572 = vmatpush1.msra.mxu0 0.0
        %573 = vmatprep.subr.mxu0 0.0
        %574 = vmatpush1.msra.mxu0 0.0
        %575 = vmatprep.subr.mxu0 0.0
        %576 = vmatpush1.msra.mxu0 0.0
        %577 = vmatprep.subr.mxu0 0.0
        %578 = vmatpush1.msra.mxu0 0.0
        %579 = vmatprep.subr.mxu0 0.0
        %580 = vmatpush1.msra.mxu0 0.0
        %581 = vmatprep.subr.mxu0 0.0
        %582 = vmatpush1.msra.mxu0 0.0
        %583 = vmatprep.subr.mxu0 0.0
        %584 = vmatpush1.msra.mxu0 0.0
        %585 = vmatprep.subr.mxu0 0.0
        %586 = vmatpush1.msra.mxu0 0.0
        %587 = vmatprep.subr.mxu0 0.0
        %588 = vmatpush1.msra.mxu0 0.0
        %589 = vmatprep.subr.mxu0 0.0
        %590 = vmatpush1.msra.mxu0 0.0
        %591 = vmatprep.subr.mxu0 0.0
        %592 = vmatpush1.msra.mxu0 0.0
        %593 = vmatprep.subr.mxu0 0.0
        %594 = vmatpush1.msra.mxu0 0.0
        %595 = vmatprep.subr.mxu0 0.0
        %596 = vmatpush1.msra.mxu0 0.0
        %597 = vmatprep.subr.mxu0 0.0
        %598 = vmatpush1.msra.mxu0 0.0
        %599 = vmatprep.subr.mxu0 0.0
        %600 = vmatpush1.msra.mxu0 0.0
        %601 = vmatprep.subr.mxu0 0.0
        %602 = vmatpush1.msra.mxu0 0.0
        %603 = vmatprep.subr.mxu0 0.0
        %604 = vmatpush1.msra.mxu0 0.0
        %605 = vmatprep.subr.mxu0 0.0
        %606 = vmatpush1.msra.mxu0 0.0
        %607 = vmatprep.subr.mxu0 0.0
        %608 = vmatpush1.msra.mxu0 0.0
        %609 = vmatprep.subr.mxu0 0.0
        %610 = vmatpush1.msra.mxu0 0.0
        %611 = vmatprep.subr.mxu0 0.0
        %612 = vmatpush1.msra.mxu0 0.0
        %613 = vmatprep.subr.mxu0 0.0
        %614 = vmatpush1.msra.mxu0 0.0
        %615 = vmatprep.subr.mxu0 0.0
        %616 = vmatpush1.msra.mxu0 0.0
        %617 = vmatprep.subr.mxu0 0.0
        %618 = vmatpush1.msra.mxu0 0.0
        %619 = vmatprep.subr.mxu0 0.0
        %620 = vmatpush1.msra.mxu0 0.0
        %621 = vmatprep.subr.mxu0 0.0
        %622 = vmatpush1.msra.mxu0 0.0
        %623 = vmatprep.mubr.f32.mxu0 0.0
        %v624 = vand.u32 %v204, 4294901760
        %625 = vmatmul.mubr.f32.gmra.mrb[0].mxu0 %v624
        %v626 = vpop.f32.mrb[0].mxu0
        %v627 = vadd.f32 %v542, %v626
        %v628 = vpop.f32.mrb[0].mxu0
        %629 = vmatprep.mubr.f32.mxu0 0.0
        %v630 = vand.u32 %v207, 4294901760
        %631 = vmatmul.mubr.f32.gmra.mrb[0].mxu0 %v630
        %v632 = vpop.f32.mrb[0].mxu0
        %v633 = vadd.f32 %v550, %v632
        %v634 = vpop.f32.mrb[0].mxu0
        %635 = vdwg.mxu0
        %636 = vmatprep.subr.mxu0 0.0
        %v637 = vand.u32 %v200, 4294901760
        %638 = vmatpush1.msra.mxu0 %v637
        %639 = vmatprep.subr.mxu0 0.0
        %v640 = vand.u32 %v211, 4294901760
        %641 = vmatpush1.msra.mxu0 %v640
        %642 = vmatprep.subr.mxu0 0.0
        %643 = vmatpush1.msra.mxu0 0.0
        %644 = vmatprep.subr.mxu0 0.0
        %645 = vmatpush1.msra.mxu0 0.0
        %646 = vmatprep.subr.mxu0 0.0
        %647 = vmatpush1.msra.mxu0 0.0
        %648 = vmatprep.subr.mxu0 0.0
        %649 = vmatpush1.msra.mxu0 0.0
        %650 = vmatprep.subr.mxu0 0.0
        %651 = vmatpush1.msra.mxu0 0.0
        %652 = vmatprep.subr.mxu0 0.0
        %653 = vmatpush1.msra.mxu0 0.0
        %654 = vmatprep.subr.mxu0 0.0
        %655 = vmatpush1.msra.mxu0 0.0
        %656 = vmatprep.subr.mxu0 0.0
        %657 = vmatpush1.msra.mxu0 0.0
        %658 = vmatprep.subr.mxu0 0.0
        %659 = vmatpush1.msra.mxu0 0.0
        %660 = vmatprep.subr.mxu0 0.0
        %661 = vmatpush1.msra.mxu0 0.0
        %662 = vmatprep.subr.mxu0 0.0
        %663 = vmatpush1.msra.mxu0 0.0
        %664 = vmatprep.subr.mxu0 0.0
        %665 = vmatpush1.msra.mxu0 0.0
        %666 = vmatprep.subr.mxu0 0.0
        %667 = vmatpush1.msra.mxu0 0.0
        %668 = vmatprep.subr.mxu0 0.0
        %669 = vmatpush1.msra.mxu0 0.0
        %670 = vmatprep.subr.mxu0 0.0
        %671 = vmatpush1.msra.mxu0 0.0
        %672 = vmatprep.subr.mxu0 0.0
        %673 = vmatpush1.msra.mxu0 0.0
        %674 = vmatprep.subr.mxu0 0.0
        %675 = vmatpush1.msra.mxu0 0.0
        %676 = vmatprep.subr.mxu0 0.0
        %677 = vmatpush1.msra.mxu0 0.0
        %678 = vmatprep.subr.mxu0 0.0
        %679 = vmatpush1.msra.mxu0 0.0
        %680 = vmatprep.subr.mxu0 0.0
        %681 = vmatpush1.msra.mxu0 0.0
        %682 = vmatprep.subr.mxu0 0.0
        %683 = vmatpush1.msra.mxu0 0.0
        %684 = vmatprep.subr.mxu0 0.0
        %685 = vmatpush1.msra.mxu0 0.0
        %686 = vmatprep.subr.mxu0 0.0
        %687 = vmatpush1.msra.mxu0 0.0
        %688 = vmatprep.subr.mxu0 0.0
        %689 = vmatpush1.msra.mxu0 0.0
        %690 = vmatprep.subr.mxu0 0.0
        %691 = vmatpush1.msra.mxu0 0.0
        %692 = vmatprep.subr.mxu0 0.0
        %693 = vmatpush1.msra.mxu0 0.0
        %694 = vmatprep.subr.mxu0 0.0
        %695 = vmatpush1.msra.mxu0 0.0
        %696 = vmatprep.subr.mxu0 0.0
        %697 = vmatpush1.msra.mxu0 0.0
        %698 = vmatprep.subr.mxu0 0.0
        %699 = vmatpush1.msra.mxu0 0.0
        %700 = vmatprep.subr.mxu0 0.0
        %701 = vmatpush1.msra.mxu0 0.0
        %702 = vmatprep.mubr.f32.mxu0 0.0
        %v703 = vand.u32 %v204, 4294901760
        %704 = vmatmul.mubr.f32.gmra.mrb[0].mxu0 %v703
        %v705 = vpop.f32.mrb[0].mxu0
        %v706 = vadd.f32 %v627, %v705
        %v707 = vpop.f32.mrb[0].mxu0
        %708 = vmatprep.mubr.f32.mxu0 0.0
        %v709 = vand.u32 %v207, 4294901760
        %710 = vmatmul.mubr.f32.gmra.mrb[0].mxu0 %v709
        %v711 = vpop.f32.mrb[0].mxu0
        %v712 = vadd.f32 %v633, %v711
        %v713 = vpop.f32.mrb[0].mxu0
        %714 = vdwg.mxu0
        %v715 = vrsqrt.pop %v706
        %v716 = vmul.f32 %v706, %v715
        %vm717 = vcmp.eq.f32.partialorder %v706, inf
        %v718 = vsel %vm717, %v706, %v716
        %vm719 = vcmp.eq.f32.partialorder %v706, 0.0
        %v720 = vand.u32 %v706, 2147483648
        %v721 = vsel %vm719, %v720, %v718
        %v722 = vrsqrt.pop %v712
        %v723 = vmul.f32 %v712, %v722
        %vm724 = vcmp.eq.f32.partialorder %v712, inf
        %v725 = vsel %vm724, %v712, %v723
        %vm726 = vcmp.eq.f32.partialorder %v712, 0.0
        %v727 = vand.u32 %v712, 2147483648
        %v728 = vsel %vm726, %v727, %v725
        %v729 = vmul.f32 %v721, 1.5707964
        %v730 = vmul.f32 %v728, 1.5707964
        %v731 = vand.u32 2147483647, %v729
        %vm732 = vcmp.le.f32.partialorder %v731, 0.7853982
        %vm733 = vcmp.lt.s32.totalorder %v729, 0
        %v734 = vand.u32 %v729, 2139095040
        %v735 = vshrl.u32 %v734, 23
        %v736 = vsub.s32 %v735, 127
        %v737 = vand.u32 2147483647, %v729
        %v738 = vand.u32 %v737, 8388607
        %v739 = vor.u32 %v738, 8388608
        %v740 = vsub.s32 0, %v739
        %v741 = vadd.s32 %v736, 1
        %vm742 = vcmp.gt.s32.totalorder %v741, 0
        %v743 = vsel %vm742, %v741, 0
        %v744 = vshrl.u32 %v743, 5
        %v745 = vand.u32 %v743, 31
        %v746 = vsub.s32 32, %v745
        %v747 = vshrl.u32 683565275, %v746
        %v748 = vshll.u32 683565275, %v745
        %v749 = vshrl.u32 2475754826, %v746
        %v750 = vor.u32 %v748, %v749
        %v751 = vshll.u32 2475754826, %v745
        %v752 = vshrl.u32 2131351028, %v746
        %v753 = vor.u32 %v751, %v752
        %v754 = vshll.u32 2131351028, %v745
        %v755 = vshrl.u32 2102212464, %v746
        %v756 = vor.u32 %v754, %v755
        %v757 = vshll.u32 2102212464, %v745
        %v758 = vshrl.u32 920167782, %v746
        %v759 = vor.u32 %v757, %v758
        %v760 = vshll.u32 920167782, %v745
        %v761 = vshrl.u32 1326507024, %v746
        %v762 = vor.u32 %v760, %v761
        %vm763 = vcmp.lt.s32.totalorder %v744, 1
        %vm764 = vcmp.lt.s32.totalorder %v744, 2
        %vm765 = vcmp.lt.s32.totalorder %v744, 3
        %vm766 = vcmp.lt.s32.totalorder %v744, 4
        %v767 = vsel %vm763, %v747, %v750
        %v768 = vsel %vm766, %v756, 2102212464
        %v769 = vsel %vm765, %v753, %v768
        %v770 = vsel %vm764, %v767, %v769
        %v771 = vsel %vm763, %v750, %v753
        %v772 = vsel %vm766, %v759, 920167782
        %v773 = vsel %vm765, %v756, %v772
        %v774 = vsel %vm764, %v771, %v773
        %v775 = vsel %vm763, %v753, %v756
        %v776 = vsel %vm766, %v762, 1326507024
        %v777 = vsel %vm765, %v759, %v776
        %v778 = vsel %vm764, %v775, %v777
        %v779 = vshll.u32 %v739, 8
        %v780 = vmul.u32.u64.compose %v779, %v778
        %v781 = vextract.low.u32 %v780
        %v782 = vextract.high.u32 %v780
        %v783 = vmul.u32.u64.compose %v779, %v774
        %v784 = vextract.low.u32 %v783
        %v785 = vextract.high.u32 %v783
        %v786 = vmul.u32 %v779, %v770
        %v787 = vadd.s32 %v782, %v784
        %vm788 = vc.u32 %v782, %v784
        %v789 = vadd.s32 %v785, 1
        %v790 = vsel %vm788, %v789, %v785
        %v791 = vadd.s32 %v786, %v790
        %v792 = vadd.s32 %v791, 536870912
        %v793 = vshrl.u32 %v792, 30
        %v794 = vshll.u32 %v793, 30
        %v795 = vsub.s32 %v791, %v794
        %vm796 = vcmp.lt.s32.totalorder %v795, 0
        %v797 = vsub.s32 0, %v795
        %v798 = vsel %vm796, %v797, %v795
        %v799 = vclz %v798
        %v800 = vsub.s32 %v799, 2
        %vm801 = vcmp.gt.s32.totalorder 0, %v800
        %v802 = vsel %vm801, 0, %v800
        %v803 = vsub.s32 32, %v802
        %v804 = vshll.u32 %v795, %v802
        %v805 = vshrl.u32 %v787, %v803
        %v806 = vor.u32 %v804, %v805
        %v807 = vsub.s32 4294967266, %v802
        %v808 = vadd.s32 %v807, 127
        %v809 = vshll.u32 %v808, 23
        %v810 = vor.u32 4788187, %v809
        %v811 = vand.u32 2147483647, %v810
        %v813 = vcvt.s32.f32 %v806
        %v814 = vmul.f32 %v813, %v811
        %v815 = vxor.u32 %v814, 2147483648
        %v816 = vsel %vm733, %v815, %v814
        %v817 = vsub.s32 4, %v793
        %v818 = vsel %vm733, %v817, %v793
        %v819 = vsel %vm732, %v729, %v816
        %v820 = vsel %vm732, 0, %v818
        %v821 = vcosq.f32.pop %v819
        %v822 = vsinq.f32.pop %v819
        %vm823 = vweird.f32 %v729
        %v824 = vand.u32 %v820, 3
        %vm825 = vcmp.lt.s32.totalorder %v824, 2
        %vm826 = vcmp.eq.s32.totalorder %v824, 0
        %v827 = vxor.u32 %v822, 2147483648
        %v828 = vsel %vm826, %v821, %v827
        %vm829 = vcmp.eq.s32.totalorder %v824, 2
        %v830 = vxor.u32 %v821, 2147483648
        %v831 = vsel %vm829, %v830, %v822
        %v832 = vsel %vm825, %v828, %v831
        %v833 = vsel %vm823, nan, %v832
        %v834 = vand.u32 2147483647, %v730
        %vm835 = vcmp.le.f32.partialorder %v834, 0.7853982
        %vm836 = vcmp.lt.s32.totalorder %v730, 0
        %v837 = vand.u32 %v730, 2139095040
        %v838 = vshrl.u32 %v837, 23
        %v839 = vsub.s32 %v838, 127
        %v840 = vand.u32 2147483647, %v730
        %v841 = vand.u32 %v840, 8388607
        %v842 = vor.u32 %v841, 8388608
        %v843 = vsub.s32 0, %v842
        %v844 = vadd.s32 %v839, 1
        %vm845 = vcmp.gt.s32.totalorder %v844, 0
        %v846 = vsel %vm845, %v844, 0
        %v847 = vshrl.u32 %v846, 5
        %v848 = vand.u32 %v846, 31
        %v849 = vsub.s32 32, %v848
        %v850 = vshrl.u32 683565275, %v849
        %v851 = vshll.u32 683565275, %v848
        %v852 = vshrl.u32 2475754826, %v849
        %v853 = vor.u32 %v851, %v852
        %v854 = vshll.u32 2475754826, %v848
        %v855 = vshrl.u32 2131351028, %v849
        %v856 = vor.u32 %v854, %v855
        %v857 = vshll.u32 2131351028, %v848
        %v858 = vshrl.u32 2102212464, %v849
        %v859 = vor.u32 %v857, %v858
        %v860 = vshll.u32 2102212464, %v848
        %v861 = vshrl.u32 920167782, %v849
        %v862 = vor.u32 %v860, %v861
        %v863 = vshll.u32 920167782, %v848
        %v864 = vshrl.u32 1326507024, %v849
        %v865 = vor.u32 %v863, %v864
        %vm866 = vcmp.lt.s32.totalorder %v847, 1
        %vm867 = vcmp.lt.s32.totalorder %v847, 2
        %vm868 = vcmp.lt.s32.totalorder %v847, 3
        %vm869 = vcmp.lt.s32.totalorder %v847, 4
        %v870 = vsel %vm866, %v850, %v853
        %v871 = vsel %vm869, %v859, 2102212464
        %v872 = vsel %vm868, %v856, %v871
        %v873 = vsel %vm867, %v870, %v872
        %v874 = vsel %vm866, %v853, %v856
        %v875 = vsel %vm869, %v862, 920167782
        %v876 = vsel %vm868, %v859, %v875
        %v877 = vsel %vm867, %v874, %v876
        %v878 = vsel %vm866, %v856, %v859
        %v879 = vsel %vm869, %v865, 1326507024
        %v880 = vsel %vm868, %v862, %v879
        %v881 = vsel %vm867, %v878, %v880
        %v882 = vshll.u32 %v842, 8
        %v883 = vmul.u32.u64.compose %v882, %v881
        %v884 = vextract.low.u32 %v883
        %v885 = vextract.high.u32 %v883
        %v886 = vmul.u32.u64.compose %v882, %v877
        %v887 = vextract.low.u32 %v886
        %v888 = vextract.high.u32 %v886
        %v889 = vmul.u32 %v882, %v873
        %v890 = vadd.s32 %v885, %v887
        %vm891 = vc.u32 %v885, %v887
        %v892 = vadd.s32 %v888, 1
        %v893 = vsel %vm891, %v892, %v888
        %v894 = vadd.s32 %v889, %v893
        %v895 = vadd.s32 %v894, 536870912
        %v896 = vshrl.u32 %v895, 30
        %v897 = vshll.u32 %v896, 30
        %v898 = vsub.s32 %v894, %v897
        %vm899 = vcmp.lt.s32.totalorder %v898, 0
        %v900 = vsub.s32 0, %v898
        %v901 = vsel %vm899, %v900, %v898
        %v902 = vclz %v901
        %v903 = vsub.s32 %v902, 2
        %vm904 = vcmp.gt.s32.totalorder 0, %v903
        %v905 = vsel %vm904, 0, %v903
        %v906 = vsub.s32 32, %v905
        %v907 = vshll.u32 %v898, %v905
        %v908 = vshrl.u32 %v890, %v906
        %v909 = vor.u32 %v907, %v908
        %v910 = vsub.s32 4294967266, %v905
        %v911 = vadd.s32 %v910, 127
        %v912 = vshll.u32 %v911, 23
        %v913 = vor.u32 4788187, %v912
        %v914 = vand.u32 2147483647, %v913
        %v916 = vcvt.s32.f32 %v909
        %v917 = vmul.f32 %v916, %v914
        %v918 = vxor.u32 %v917, 2147483648
        %v919 = vsel %vm836, %v918, %v917
        %v920 = vsub.s32 4, %v896
        %v921 = vsel %vm836, %v920, %v896
        %v922 = vsel %vm835, %v730, %v919
        %v923 = vsel %vm835, 0, %v921
        %v924 = vcosq.f32.pop %v922
        %v925 = vsinq.f32.pop %v922
        %vm926 = vweird.f32 %v730
        %v927 = vand.u32 %v923, 3
        %vm928 = vcmp.lt.s32.totalorder %v927, 2
        %vm929 = vcmp.eq.s32.totalorder %v927, 0
        %v930 = vxor.u32 %v925, 2147483648
        %v931 = vsel %vm929, %v924, %v930
        %vm932 = vcmp.eq.s32.totalorder %v927, 2
        %v933 = vxor.u32 %v924, 2147483648
        %v934 = vsel %vm932, %v933, %v925
        %v935 = vsel %vm928, %v931, %v934
        %v936 = vsel %vm926, nan, %v935
        %v937 = vadd.f32 %v833, 1.0
        %v938 = vadd.f32 %v936, 1.0
        %v939 = vmul.f32 %v937, 0.5
        %v940 = vmul.f32 %v938, 0.5
        %v941 = vmul.f32 %v939, %v194
        %v942 = vmul.f32 %v940, %v195
        %943 = vst [vmem:[%s180] sm:$0xff] %v941
        %944 = vst [vmem:[%s180 + $0x8] sm:$0xff] %v942
        %s945 = sand.u32 %s98, 1
        %s946 = scalar_lea.sflag [#allocation3], %s945
        %s947 = sand.u32 %s98, 1
        %s948 = smul.addr %s947, 16
        %s949 = scalar_lea.vmem [#allocation2], %s948
        // Predicated region
        $region33: #{tpu_custom_call.1} parent=31 // pred_check
          %p950 = pneg %p108
        $region34: #{tpu_custom_call.1} parent=31 // pred_check_branch
          %952 = sbr.rel (%p950) target = $region36
        $region35: #{tpu_custom_call.1} parent=31 // pred_region
          %s953 = smul.u32 2, %s17
          %s955 = ssub.s32 256, 256
          %956 = vsyncadd %s946, %s955
          %s957 = smul.addr %s953, 128
          %s958 = scalar_lea.hbm %s3, %s957
          %s959 = sshll.u32 %s949, 4
          %s960 = int_to_ptr.vmem [resolvable:$true] %s959
          %965 = dma.vmem_to_hbm [thread:$0]  %s960, 256, %s958, %s946, 128, 128, 8
        $region36: #{tpu_custom_call.1} parent=31 // pred_fallthru
          _
      $region32: #{tpu_custom_call.1} parent=5 // pred_fallthru
        _
      %p966 = scmp.le.s32.totalorder 2, %s12
      // Predicated region
      $region37: #{tpu_custom_call.1} parent=5 // pred_check
        %p967 = pneg %p966
      $region38: #{tpu_custom_call.1} parent=5 // pred_check_branch
        %969 = sbr.rel (%p967) target = $region40
      $region39: #{tpu_custom_call.1} parent=5 // pred_region
        %s970 = ssub.s32 %s12, 2
        // Predicated region
        $region41: #{tpu_custom_call.1} parent=39 // pred_check
          %p971 = pneg %p114
        $region42: #{tpu_custom_call.1} parent=39 // pred_check_branch
          %973 = sbr.rel (%p971) target = $region44
        $region43: #{tpu_custom_call.1} parent=39 // pred_region
          %s974 = sand.u32 %s99, 1
          %s975 = scalar_lea.sflag [#allocation3], %s974
          %s976 = sand.u32 %s99, 1
          %s977 = smul.addr %s976, 16
          %s978 = scalar_lea.vmem [#allocation2], %s977
          %979 = dma.done %s975, 256
        $region44: #{tpu_custom_call.1} parent=39 // pred_fallthru
          _
      $region40: #{tpu_custom_call.1} parent=5 // pred_fallthru
        _
    $region6: #{tpu_custom_call.1} parent=1 // loop_footer
      %s16 = sadd.s32 1, %s12
    $region7: #{tpu_custom_call.1} parent=1 // loop_footer_branch
      %11 = sbr.rel target = $region3
    $region8: #{tpu_custom_call.1} parent=1 // loop_exit
      _
    %980 = vsyncpa [#allocation3], 1
    %s981 = scalar_lea.sflag [#allocation3], 1
    %982 = vsyncpa %s981, 1

</llo_original>
